<compile_context>
chip_gen: v7x
topology: tpu7x:2x2x1
jax: 0.10.0
libtpu: 0.0.40
codegen_flags: <defaults>
</compile_context>

<pallas_src>
import functools

import jax
import jax.numpy as jnp
from jax import lax
from jax.experimental import pallas as pl
from jax.experimental.pallas import tpu as pltpu


def _ce_partial_kernel(logits_ref, tgt_ref, out_ref, *, n_rows, block_rows):
    """Per-row-tile partial sum of cross-entropy NLL.

    logits_ref : VMEM (TN, C)   native dtype (bf16 / f32)
    tgt_ref    : VMEM (TN, 1)   int32 class indices
    out_ref    : VMEM (1, 128)  f32 -- this tile's partial NLL sum broadcast
                 across the 128 lanes (lane-dense, unmasked store).
    """
    i = pl.program_id(0)

    x = logits_ref[...]                                          # (TN, C) native
    # Row max in the native dtype (exact for native values), upcast once and
    # shift.  All downstream math lives in the shifted domain, so the f32
    # copy of the raw logits is never kept live (one fewer (TN, C) temp).
    m = jnp.max(x, axis=-1, keepdims=True)                       # (TN, 1)
    shifted = x.astype(jnp.float32) - m.astype(jnp.float32)      # (TN, C) f32, <=0

    sumexp = jnp.sum(jnp.exp(shifted), axis=-1, keepdims=True)   # (TN, 1), >=1

    # Gather the target logit via iota == target mask (no dynamic gather on
    # TPU), selecting from the shifted values: the m cancels exactly in
    #   lse - x_t == log(sum exp(x - m)) - (x_t - m).
    classes = lax.broadcasted_iota(jnp.int32, shifted.shape, 1)  # (TN, C)
    onehot = classes == tgt_ref[...]                             # (TN, C) bool
    picked_shifted = jnp.sum(jnp.where(onehot, shifted, 0.0),
                             axis=-1, keepdims=True)             # (TN, 1)

    nll = jnp.log(sumexp) - picked_shifted                       # (TN, 1)

    # Mask rows past the true end of the array (last partial tile).  Padded
    # rows ran the full LSE pipeline on undefined data; any NaN/Inf they made
    # is dropped here because jnp.where is a select, not a multiply.
    row = lax.broadcasted_iota(jnp.int32, nll.shape, 0) + i * block_rows
    nll = jnp.where(row < n_rows, nll, 0.0)

    partial = jnp.sum(nll, axis=0, keepdims=True)                # (1, 1)
    out_ref[...] = jnp.broadcast_to(partial, (1, 128))


def _sublane_multiple(itemsize):
    # Native sublane packing: 8 rows for 32-bit, 16 for 16-bit, 32 for 8-bit.
    return max(8, 32 // int(itemsize))


def _vmem_config():
    """Returns (vmem_limit_bytes, per-step working-set budget in bytes)."""
    kind = ""
    try:
        kind = jax.devices()[0].device_kind.lower()
    except Exception:
        pass
    if ("v5" in kind) or ("v6" in kind):
        # 128 MiB physical VMEM: raise the 16/32 MiB scoped default and allow
        # a bigger per-step working set.
        return 64 << 20, 40 << 20
    # v7x (64 MiB physical per TC) or unknown chip: stay conservative.
    return 48 << 20, 28 << 20


def _pick_block_rows(n, c, itemsize, budget_bytes):
    """Row-tile size budgeted against the real per-step VMEM footprint:
      2 x double-buffered native-dtype logits block      -> 2*itemsize / elem
      ~5 full-size f32-ish in-kernel temporaries         -> 20 bytes / elem
    Always a multiple of the dtype's sublane packing, never wildly > N."""
    per_elem = 2 * int(itemsize) + 20
    sub = _sublane_multiple(itemsize)
    tn = budget_bytes // (c * per_elem)
    tn = max(sub, (tn // sub) * sub)
    tn = min(tn, max(sub, ((n + sub - 1) // sub) * sub))
    return int(tn)


def moe_loss_transformer(o, target, l_importance, l_load, *,
                         w_importance=1.0, w_load=1.0, block_rows=None):
    """JAX wrapper mirroring MoELossTransformer.forward(output, target) with
    output = (o, l_importance, l_load) and base loss = CrossEntropyLoss."""
    n, c = o.shape
    itemsize = jnp.dtype(o.dtype).itemsize
    sub = _sublane_multiple(itemsize)
    vmem_limit, budget = _vmem_config()

    if block_rows is None:
        block_rows = _pick_block_rows(n, c, itemsize, budget)
    block_rows = max(sub, (int(block_rows) // sub) * sub)
    g = pl.cdiv(n, block_rows)

    tgt2d = target.reshape(n, 1).astype(jnp.int32)

    kernel = functools.partial(_ce_partial_kernel,
                               n_rows=n, block_rows=block_rows)

    cost = pl.CostEstimate(
        flops=6 * n * c,
        transcendentals=n * c + n,
        bytes_accessed=n * c * itemsize + n * 4 + g * 128 * 4,
    )

    partials = pl.pallas_call(
        kernel,
        out_shape=jax.ShapeDtypeStruct((1, g * 128), jnp.float32),
        grid_spec=pltpu.PrefetchScalarGridSpec(
            num_scalar_prefetch=0,
            grid=(g,),
            in_specs=[
                pl.BlockSpec((block_rows, c), lambda i: (i, 0)),   # logits tile
                pl.BlockSpec((block_rows, 1), lambda i: (i, 0)),   # target tile
            ],
            out_specs=pl.BlockSpec((1, 128), lambda i: (0, i)),    # per-tile partial
        ),
        compiler_params=pltpu.CompilerParams(
            dimension_semantics=("parallel",),   # megacore-shardable on v7x
            vmem_limit_bytes=int(vmem_limit),
        ),
        cost_estimate=cost,
    )(o, tgt2d)

    # Tiny epilogue in the wrapper: G-element reduce, 1/N scale, aux-loss add.
    per_tile = partials.reshape(g, 128)[:, 0]          # each tile's partial once
    base = jnp.sum(per_tile) / jnp.float32(n)          # mean-reduction CE
    extra = (jnp.float32(w_importance) * l_importance.astype(jnp.float32)
             + jnp.float32(w_load) * l_load.astype(jnp.float32))
    return base + extra


def _reference(o, target, l_importance, l_load, w_importance=1.0, w_load=1.0):
    logp = jax.nn.log_softmax(o.astype(jnp.float32), axis=-1)
    nll = -jnp.take_along_axis(logp, target[:, None].astype(jnp.int32), axis=-1)
    return (jnp.mean(nll)
            + jnp.float32(w_importance) * l_importance.astype(jnp.float32)
            + jnp.float32(w_load) * l_load.astype(jnp.float32))


if __name__ == "__main__":
    key = jax.random.PRNGKey(0)
    k1, k2, k3, k4 = jax.random.split(key, 4)

    # Small transformer-classifier shapes; N deliberately NOT a multiple of the
    # row tile so the multi-step grid + partial-tile masking path is exercised.
    N, C = 40, 128
    logits = jax.random.normal(k1, (N, C), dtype=jnp.float32).astype(jnp.bfloat16)
    target = jax.random.randint(k2, (N,), 0, C, dtype=jnp.int32)
    l_importance = jax.random.uniform(k3, (), dtype=jnp.float32)
    l_load = jax.random.uniform(k4, (), dtype=jnp.float32)

    # Deterministic "parameters" of the module (no learnable weights exist).
    w_importance, w_load = 0.7, 1.3

    # block_rows=16 = bf16 native (16,128) sublane packing -> 3 grid steps,
    # last one partial (8 valid rows), exercising the masked tail path.
    loss = moe_loss_transformer(logits, target, l_importance, l_load,
                                w_importance=w_importance, w_load=w_load,
                                block_rows=16)
    loss = jax.block_until_ready(loss)

    ref = _reference(logits, target, l_importance, l_load,
                     w_importance, w_load)
    assert jnp.allclose(loss, ref, rtol=1e-5, atol=1e-5), (loss, ref)

    # Also exercise the auto tile-size path (single big tile for this small N).
    loss_auto = jax.block_until_ready(
        moe_loss_transformer(logits, target, l_importance, l_load,
                             w_importance=w_importance, w_load=w_load))
    assert jnp.allclose(loss_auto, ref, rtol=1e-5, atol=1e-5), (loss_auto, ref)

    print("KERNEL_OK")
</pallas_src>

<mosaic_0001>
module attributes {stable_mosaic.version = 11 : i64} {
  func.func @_ce_partial_kernel(%arg0: i32, %arg1: memref<16x128xbf16, #tpu.memory_space<vmem>>, %arg2: memref<16x1xi32, #tpu.memory_space<vmem>>, %arg3: memref<1x128xf32, #tpu.memory_space<vmem>>) attributes {dimension_semantics = [#tpu.dimension_semantics<parallel>], iteration_bounds = array<i64: 3>, scalar_prefetch = 0 : i64, scratch_operands = 0 : i64, tpu.core_type = #tpu.core_type<tc>, window_params = [{transform_indices = @transform_0, window_bounds = array<i64: 16, 128>}, {transform_indices = @transform_1, window_bounds = array<i64: 16, 1>}, {transform_indices = @transform_2, window_bounds = array<i64: 1, 128>}]} {
    %c0 = arith.constant 0 : index
    %c0_0 = arith.constant 0 : index
    %0 = vector.load %arg1[%c0, %c0_0] : memref<16x128xbf16, #tpu.memory_space<vmem>>, vector<16x128xbf16>
    %cst = arith.constant dense<0xFF80> : vector<16xbf16>
    %1 = vector.multi_reduction <maximumf>, %0, %cst [1] : vector<16x128xbf16> to vector<16xbf16>
    %2 = vector.shape_cast %1 : vector<16xbf16> to vector<16x1xbf16>
    %3 = arith.extf %0 : vector<16x128xbf16> to vector<16x128xf32>
    %4 = arith.extf %2 : vector<16x1xbf16> to vector<16x1xf32>
    %5 = vector.broadcast %4 : vector<16x1xf32> to vector<16x128xf32>
    %6 = arith.subf %3, %5 : vector<16x128xf32>
    %7 = math.exp %6 : vector<16x128xf32>
    %cst_1 = arith.constant dense<0.000000e+00> : vector<16xf32>
    %8 = vector.multi_reduction <add>, %7, %cst_1 [1] : vector<16x128xf32> to vector<16xf32>
    %9 = vector.shape_cast %8 : vector<16xf32> to vector<16x1xf32>
    %10 = tpu.iota {dimensions = array<i32: 1>} : vector<16x128xi32>
    %c0_2 = arith.constant 0 : index
    %c0_3 = arith.constant 0 : index
    %11 = vector.load %arg2[%c0_2, %c0_3] : memref<16x1xi32, #tpu.memory_space<vmem>>, vector<16x1xi32>
    %12 = vector.broadcast %11 : vector<16x1xi32> to vector<16x128xi32>
    %13 = arith.cmpi eq, %10, %12 : vector<16x128xi32>
    %cst_4 = arith.constant 0.000000e+00 : f32
    %14 = vector.broadcast %cst_4 : f32 to vector<16x128xf32>
    %15 = arith.select %13, %6, %14 : vector<16x128xi1>, vector<16x128xf32>
    %cst_5 = arith.constant dense<0.000000e+00> : vector<16xf32>
    %16 = vector.multi_reduction <add>, %15, %cst_5 [1] : vector<16x128xf32> to vector<16xf32>
    %17 = vector.shape_cast %16 : vector<16xf32> to vector<16x1xf32>
    %18 = math.log %9 : vector<16x1xf32>
    %19 = arith.subf %18, %17 : vector<16x1xf32>
    %20 = tpu.iota {dimensions = array<i32: 0>} : vector<16x1xi32>
    %c16_i32 = arith.constant 16 : i32
    %21 = arith.muli %arg0, %c16_i32 : i32
    %22 = vector.broadcast %21 : i32 to vector<16x1xi32>
    %23 = arith.addi %20, %22 : vector<16x1xi32>
    %c40_i32 = arith.constant 40 : i32
    %24 = vector.broadcast %c40_i32 : i32 to vector<16x1xi32>
    %25 = arith.cmpi slt, %23, %24 : vector<16x1xi32>
    %cst_6 = arith.constant 0.000000e+00 : f32
    %26 = vector.broadcast %cst_6 : f32 to vector<16x1xf32>
    %27 = arith.select %25, %19, %26 : vector<16x1xi1>, vector<16x1xf32>
    %cst_7 = arith.constant dense<0.000000e+00> : vector<1xf32>
    %28 = vector.multi_reduction <add>, %27, %cst_7 [0] : vector<16x1xf32> to vector<1xf32>
    %29 = vector.shape_cast %28 : vector<1xf32> to vector<1x1xf32>
    %30 = vector.shape_cast %29 : vector<1x1xf32> to vector<1x1xf32>
    %31 = vector.broadcast %30 : vector<1x1xf32> to vector<1x128xf32>
    %c0_8 = arith.constant 0 : index
    %c0_9 = arith.constant 0 : index
    %32 = vector.load %arg3[%c0_8, %c0_9] : memref<1x128xf32, #tpu.memory_space<vmem>>, vector<1x128xf32>
    tpu.vector_store %arg3[%c0_8, %c0_9], %31 {strides = array<i32>} : memref<1x128xf32, #tpu.memory_space<vmem>>, vector<1x128xf32>,
    return
  }
  func.func @transform_0(%arg0: i32) -> (i32, i32) {
    %c0_i32 = arith.constant 0 : i32
    %c0_i32_0 = arith.constant 0 : i32
    return %arg0, %c0_i32 : i32, i32
  }
  func.func @transform_1(%arg0: i32) -> (i32, i32) {
    %c0_i32 = arith.constant 0 : i32
    %c0_i32_0 = arith.constant 0 : i32
    return %arg0, %c0_i32 : i32, i32
  }
  func.func @transform_2(%arg0: i32) -> (i32, i32) {
    %c0_i32 = arith.constant 0 : i32
    %c0_i32_0 = arith.constant 0 : i32
    return %c0_i32, %arg0 : i32, i32
  }
}

</mosaic_0001>

<llo_original>
// kernel: tpu_custom_call.1
$region0: #{tpu_custom_call.1}
  #allocation0 [shape = 'u32[]', space=smem, size = 0x4, offset = 0x4, fixed_abs, tag = 'smem constant byte address 0x4 - core index']
  #allocation1 [shape = 'u32[144,128]{1,0:T(1,128)}', space=vmem, size = 0x12000, scoped, tag = 'internal scratch']
  %s0 = inlined_call_operand.vmem [shape: bf16[40,128], index: 0, kind: input, shape index: {}]
  %s1 = inlined_call_operand.vmem [shape: s32[40,1], index: 1, kind: input, shape index: {}]
  %s2 = inlined_call_operand.hbm [shape: f32[1,384], index: 2, kind: output, shape index: {}]
  %s3 = sld [smem:[#allocation0]]
  $region41: #{tpu_custom_call.1} parent=0
    _
  %s5 = ssub.s32 1, %s3
  %s6 = scalar_select 0, %s5, %s3
  $region1: #{tpu_custom_call.1} parent=0
    #allocation2 [shape = 'u8[1024]{0}', space=vmem, size = 0x400, scoped, tag = 'output window, operand 0']
    #allocation3 [shape = 's32[2]{0}', space=sflag, size = 0x8, scoped, tag = 'scoped memory for tpu_custom_call.1']
    %7 = vsyncpa [#allocation3], 0
    %s8 = scalar_lea.sflag [#allocation3], 1
    %9 = vsyncpa %s8, 0
    loop: start=0, step=1, limit=5
    $region2: #{tpu_custom_call.1} parent=1 // loop_pre_header
      _
    $region3: #{tpu_custom_call.1} parent=1 // loop_header
      %s11 = sphi 0, %s15
      %p12 = scmp.ge.s32.totalorder %s11, 5
      %s21 = sphi 0, %s23
      %s24 = sphi 0, %s21
      %s25 = sphi 0, %s24
      %s41 = sphi 0, %s25
      %s47 = sphi 0, %s49
      %s50 = sphi 0, %s47
      %s51 = sphi 0, %s50
      %s67 = sphi 0, %s51
      %s73 = sphi 0, %s75
      %s76 = sphi 0, %s73
      %s77 = sphi 0, %s76
      %s93 = sphi 0, %s77
    $region4: #{tpu_custom_call.1} parent=1 // loop_header_branch
      %14 = sbr.rel (%p12) target = $region8
    $region5: #{tpu_custom_call.1} parent=1 // loop_body
      %s16 = ssub.s32 %s11, 1
      %s17 = ssub.s32 %s11, 2
      %s18 = sadd.s32 %s11, 1
      %s19 = ssub.s32 %s11, %s18
      %p20 = scmp.eq.s32.totalorder %s19, 0
      %s22 = sadd.s32 %s21, 1
      %s23 = scalar_select %p20, %s21, %s22
      %p26 = pneg %p20
      %p27 = scmp.eq.s32.totalorder %s11, 2
      %p28 = por %p26, %p27
      %p29 = scmp.ne.s32.totalorder %s21, %s24
      %p30 = scmp.eq.s32.totalorder %s11, 0
      %p31 = por %p29, %p30
      %p32 = scmp.ne.s32.totalorder %s21, %s24
      %p33 = scmp.eq.s32.totalorder %s16, 2
      %p34 = por %p32, %p33
      %p35 = scmp.ne.s32.totalorder %s24, %s25
      %p36 = scmp.eq.s32.totalorder %s16, 0
      %p37 = por %p35, %p36
      %p38 = scmp.ne.s32.totalorder %s24, %s25
      %p39 = scmp.eq.s32.totalorder %s17, 2
      %p40 = por %p38, %p39
      %p42 = scmp.ne.s32.totalorder %s25, %s41
      %p43 = scmp.eq.s32.totalorder %s17, 0
      %p44 = por %p42, %p43
      %s45 = ssub.s32 %s11, %s18
      %p46 = scmp.eq.s32.totalorder %s45, 0
      %s48 = sadd.s32 %s47, 1
      %s49 = scalar_select %p46, %s47, %s48
      %p52 = pneg %p46
      %p53 = scmp.eq.s32.totalorder %s11, 2
      %p54 = por %p52, %p53
      %p55 = scmp.ne.s32.totalorder %s47, %s50
      %p56 = scmp.eq.s32.totalorder %s11, 0
      %p57 = por %p55, %p56
      %p58 = scmp.ne.s32.totalorder %s47, %s50
      %p59 = scmp.eq.s32.totalorder %s16, 2
      %p60 = por %p58, %p59
      %p61 = scmp.ne.s32.totalorder %s50, %s51
      %p62 = scmp.eq.s32.totalorder %s16, 0
      %p63 = por %p61, %p62
      %p64 = scmp.ne.s32.totalorder %s50, %s51
      %p65 = scmp.eq.s32.totalorder %s17, 2
      %p66 = por %p64, %p65
      %p68 = scmp.ne.s32.totalorder %s51, %s67
      %p69 = scmp.eq.s32.totalorder %s17, 0
      %p70 = por %p68, %p69
      %s71 = ssub.s32 %s11, %s18
      %p72 = scmp.eq.s32.totalorder %s71, 0
      %s74 = sadd.s32 %s73, 1
      %s75 = scalar_select %p72, %s73, %s74
      %p78 = pneg %p72
      %p79 = scmp.eq.s32.totalorder %s11, 2
      %p80 = por %p78, %p79
      %p81 = scmp.ne.s32.totalorder %s73, %s76
      %p82 = scmp.eq.s32.totalorder %s11, 0
      %p83 = por %p81, %p82
      %p84 = scmp.ne.s32.totalorder %s73, %s76
      %p85 = scmp.eq.s32.totalorder %s16, 2
      %p86 = por %p84, %p85
      %p87 = scmp.ne.s32.totalorder %s76, %s77
      %p88 = scmp.eq.s32.totalorder %s16, 0
      %p89 = por %p87, %p88
      %p90 = scmp.ne.s32.totalorder %s76, %s77
      %p91 = scmp.eq.s32.totalorder %s17, 2
      %p92 = por %p90, %p91
      %p94 = scmp.ne.s32.totalorder %s77, %s93
      %p95 = scmp.eq.s32.totalorder %s17, 0
      %p96 = por %p94, %p95
      %p97 = scmp.le.s32.totalorder 1, %s11
      %p98 = scmp.lt.s32.totalorder %s11, 4
      %p99 = pnand %p97, %p98
      %p100 = pneg %p99
      // Predicated region
      $region9: #{tpu_custom_call.1} parent=5 // pred_check
        _
      $region10: #{tpu_custom_call.1} parent=5 // pred_check_branch
        %102 = sbr.rel (%p99) target = $region12
      $region11: #{tpu_custom_call.1} parent=5 // pred_region
        %s103 = ssub.s32 %s11, 1
      $region12: #{tpu_custom_call.1} parent=5 // pred_fallthru
        _
      %p104 = scmp.lt.s32.totalorder %s11, 3
      // Predicated region
      $region13: #{tpu_custom_call.1} parent=5 // pred_check
        %p105 = pneg %p104
      $region14: #{tpu_custom_call.1} parent=5 // pred_check_branch
        %107 = sbr.rel (%p105) target = $region16
      $region15: #{tpu_custom_call.1} parent=5 // pred_region
        // Predicated region
        $region17: #{tpu_custom_call.1} parent=15 // pred_check
          %p108 = pneg %p31
        $region18: #{tpu_custom_call.1} parent=15 // pred_check_branch
          %110 = sbr.rel (%p108) target = $region20
        $region19: #{tpu_custom_call.1} parent=15 // pred_region
          %s111 = smul.u32 2, %s11
          %s112 = ssub.s32 5, %s111
          %p113 = scmp.lt.s32.totalorder %s112, 2
          %s114 = scalar_select %p113, %s112, 2
          %s115 = smul.u32 64, %s114
          %p116 = scmp.lt.s32.totalorder %s111, 4
          %s117 = scalar_select %p116, %s111, 4
          %s118 = smul.addr %s117, 4
          %s119 = scalar_lea.vmem %s0, %s118
          %s120 = smul.u32 2, %s11
          %s121 = ssub.s32 5, %s120
          %p122 = scmp.lt.s32.totalorder %s121, 2
          %s123 = scalar_select %p122, %s121, 2
          %s124 = smul.u32 64, %s123
        $region20: #{tpu_custom_call.1} parent=15 // pred_fallthru
          _
        // Predicated region
        $region21: #{tpu_custom_call.1} parent=15 // pred_check
          %p125 = pneg %p57
        $region22: #{tpu_custom_call.1} parent=15 // pred_check_branch
          %127 = sbr.rel (%p125) target = $region24
        $region23: #{tpu_custom_call.1} parent=15 // pred_region
          %s128 = smul.u32 2, %s11
          %s129 = ssub.s32 5, %s128
          %p130 = scmp.lt.s32.totalorder %s129, 2
          %s131 = scalar_select %p130, %s129, 2
          %s132 = smul.u32 128, %s131
          %p133 = scmp.lt.s32.totalorder %s128, 4
          %s134 = scalar_select %p133, %s128, 4
          %s135 = smul.addr %s134, 8
          %s136 = scalar_lea.vmem %s1, %s135
          %s137 = smul.u32 2, %s11
          %s138 = ssub.s32 5, %s137
          %p139 = scmp.lt.s32.totalorder %s138, 2
          %s140 = scalar_select %p139, %s138, 2
          %s141 = smul.u32 128, %s140
        $region24: #{tpu_custom_call.1} parent=15 // pred_fallthru
          _
      $region16: #{tpu_custom_call.1} parent=5 // pred_fallthru
        _
      %p142 = scmp.le.s32.totalorder 1, %s11
      %p143 = scmp.lt.s32.totalorder %s11, 4
      %p144 = pnand %p142, %p143
      %p145 = pneg %p144
      // Predicated region
      $region25: #{tpu_custom_call.1} parent=5 // pred_check
        _
      $region26: #{tpu_custom_call.1} parent=5 // pred_check_branch
        %147 = sbr.rel (%p144) target = $region28
      $region27: #{tpu_custom_call.1} parent=5 // pred_region
        %s148 = ssub.s32 %s11, 1
        %s149 = smul.u32 2, %s16
        %s150 = ssub.s32 5, %s149
        %p151 = scmp.lt.s32.totalorder %s150, 2
        %s152 = scalar_select %p151, %s150, 2
        %s153 = smul.u32 64, %s152
        %p154 = scmp.lt.s32.totalorder %s149, 4
        %s155 = scalar_select %p154, %s149, 4
        %s156 = smul.addr %s155, 4
        %s157 = scalar_lea.vmem %s0, %s156
        %p158 = pneg %p37
        %p159 = pneg %p34
        %s160 = smul.u32 2, %s16
        %s161 = ssub.s32 5, %s160
        %p162 = scmp.lt.s32.totalorder %s161, 2
        %s163 = scalar_select %p162, %s161, 2
        %s164 = smul.u32 128, %s163
        %p165 = scmp.lt.s32.totalorder %s160, 4
        %s166 = scalar_select %p165, %s160, 4
        %s167 = smul.addr %s166, 8
        %s168 = scalar_lea.vmem %s1, %s167
        %p169 = pneg %p63
        %p170 = pneg %p60
        %p171 = pneg %p89
        %p172 = pneg %p86
        %s173 = sand.u32 %s76, 1
        %s174 = scalar_lea.sflag [#allocation3], %s173
        %s175 = sand.u32 %s76, 1
        %s176 = scalar_lea.vmem [#allocation2], %s175
        %s177 = smul.u32 2, %s16
        %s178 = ssub.s32 5, %s177
        %p179 = scmp.lt.s32.totalorder %s178, 2
        %s180 = scalar_select %p179, %s178, 2
        %s181 = smul.u32 64, %s180
        %p182 = scmp.lt.s32.totalorder %s177, 4
        %s183 = scalar_select %p182, %s177, 4
        %s184 = smul.addr %s183, 4
        %s185 = scalar_lea.vmem %s0, %s184
        %s186 = smul.u32 2, %s16
        %s187 = ssub.s32 5, %s186
        %p188 = scmp.lt.s32.totalorder %s187, 2
        %s189 = scalar_select %p188, %s187, 2
        %s190 = smul.u32 64, %s189
        %s191 = smul.u32 2, %s16
        %s192 = ssub.s32 5, %s191
        %p193 = scmp.lt.s32.totalorder %s192, 2
        %s194 = scalar_select %p193, %s192, 2
        %s195 = smul.u32 128, %s194
        %p196 = scmp.lt.s32.totalorder %s191, 4
        %s197 = scalar_select %p196, %s191, 4
        %s198 = smul.addr %s197, 8
        %s199 = scalar_lea.vmem %s1, %s198
        %s200 = smul.u32 2, %s16
        %s201 = ssub.s32 5, %s200
        %p202 = scmp.lt.s32.totalorder %s201, 2
        %s203 = scalar_select %p202, %s201, 2
        %s204 = smul.u32 128, %s203
        %v205 = vld [vmem:[%s185] sm:$0xf]
        %v206 = vld [vmem:[%s185 + $0x4] sm:$0xf]
        %v209 = vunpack.c.l.b16 %v205
        %v210 = vunpack.c.l.b16 %v206
        %v211 = vpack.c.b16 %v210, %v209
        %213 = vmax.xlane.bf16.xlu0 %v211
        %v214 = vpop.xlane.xlu0 %213
        %v215 = vunpack.c.l.bf16 %v205
        %v216 = vunpack.c.l.bf16 %v206
        %v217 = vunpack.c.l.bf16 %v214
        %v218 = vunpack.c.h.bf16 %v214
        %v219 = vsub.f32 %v215, %v217
        %v220 = vsub.f32 %v216, %v218
        %v221 = vmul.f32 %v219, 1.442695
        %v222 = vpow.pop %v221
        %v223 = vmul.f32 %v220, 1.442695
        %v224 = vpow.pop %v223
        %225 = vadd.xlane.f32.xlu0 %v222
        %v226 = vpop.xlane.xlu0 %225
        %227 = vadd.xlane.f32.xlu0 %v224
        %v228 = vpop.xlane.xlu0 %227
        %v229 = vlaneseq
        %v230 = vand.u32 %v229, 127
        %v231 = vld [vmem:[%s199] sm:$0xff]
        %v232 = vld [vmem:[%s199 + $0x8] sm:$0xff]
        %233 = vset.pattern.permute.xlu0 0
        %234 = vperm.xlu0 %233, %v231
        %v235 = vpop.permute.xlu0 %234
        %236 = vset.pattern.permute.xlu0 0
        %237 = vperm.xlu0 %236, %v232
        %v238 = vpop.permute.xlu0 %237
        %vm239 = vcmp.eq.s32.totalorder %v230, %v235
        %vm240 = vcmp.eq.s32.totalorder %v230, %v238
        %v241 = vsel %vm239, %v219, 0.0
        %v242 = vsel %vm240, %v220, 0.0
        %243 = vadd.xlane.f32.xlu0 %v241
        %v244 = vpop.xlane.xlu0 %243
        %245 = vadd.xlane.f32.xlu0 %v242
        %v246 = vpop.xlane.xlu0 %245
        %v247 = vlog2.pop %v226
        %v248 = vmul.f32 %v247, 0.6931472
        %v249 = vlog2.pop %v228
        %v250 = vmul.f32 %v249, 0.6931472
        %v251 = vsub.f32 %v248, %v244
        %v252 = vsub.f32 %v250, %v246
        %v253 = vlaneseq
        %v254 = vshrl.u32 %v253, 7
        %v255 = vadd.s32 %v254, 8
        %s256 = smul.u32 %s16, 16
        %v257 = vstv %s256
        %v258 = vadd.s32 %v254, %v257
        %v259 = vadd.s32 %v255, %v257
        %vm260 = vcmp.lt.s32.totalorder %v258, 40
        %vm261 = vcmp.lt.s32.totalorder %v259, 40
        %v262 = vsel %vm260, %v251, 0.0
        %v263 = vsel %vm261, %v252, 0.0
        %v264 = vadd.f32 %v262, %v263
        %v265 = vrot.slane %v264, 4
        %v266 = vadd.f32 %v264, %v265
        %v267 = vrot.slane %v266, 2
        %v268 = vadd.f32 %v266, %v267
        %v269 = vrot.slane %v268, 1
        %v270 = vadd.f32 %v268, %v269
        %271 = vst [vmem:[%s176] sm:$0x1] %v270
        %s272 = sand.u32 %s76, 1
        %s273 = scalar_lea.sflag [#allocation3], %s272
        %s274 = sand.u32 %s76, 1
        %s275 = scalar_lea.vmem [#allocation2], %s274
        // Predicated region
        $region29: #{tpu_custom_call.1} parent=27 // pred_check
          %p276 = pneg %p86
        $region30: #{tpu_custom_call.1} parent=27 // pred_check_branch
          %278 = sbr.rel (%p276) target = $region32
        $region31: #{tpu_custom_call.1} parent=27 // pred_region
          %s280 = ssub.s32 16, 16
          %281 = vsyncadd %s273, %s280
          %s282 = smul.addr %s16, 16
          %s283 = scalar_lea.hbm %s2, %s282
          %s285 = sshll.u32 %s275, 4
          %s286 = int_to_ptr.vmem [resolvable:$true] %s285
          %288 = dma.vmem_to_hbm [thread:$0]  %s286, 16, %s283, %s273
        $region32: #{tpu_custom_call.1} parent=27 // pred_fallthru
          _
      $region28: #{tpu_custom_call.1} parent=5 // pred_fallthru
        _
      %p289 = scmp.le.s32.totalorder 2, %s11
      // Predicated region
      $region33: #{tpu_custom_call.1} parent=5 // pred_check
        %p290 = pneg %p289
      $region34: #{tpu_custom_call.1} parent=5 // pred_check_branch
        %292 = sbr.rel (%p290) target = $region36
      $region35: #{tpu_custom_call.1} parent=5 // pred_region
        %s293 = ssub.s32 %s11, 2
        // Predicated region
        $region37: #{tpu_custom_call.1} parent=35 // pred_check
          %p294 = pneg %p92
        $region38: #{tpu_custom_call.1} parent=35 // pred_check_branch
          %296 = sbr.rel (%p294) target = $region40
        $region39: #{tpu_custom_call.1} parent=35 // pred_region
          %s297 = sand.u32 %s77, 1
          %s298 = scalar_lea.sflag [#allocation3], %s297
          %s299 = sand.u32 %s77, 1
          %s300 = scalar_lea.vmem [#allocation2], %s299
          %301 = dma.done %s298, 16
        $region40: #{tpu_custom_call.1} parent=35 // pred_fallthru
          _
      $region36: #{tpu_custom_call.1} parent=5 // pred_fallthru
        _
    $region6: #{tpu_custom_call.1} parent=1 // loop_footer
      %s15 = sadd.s32 1, %s11
    $region7: #{tpu_custom_call.1} parent=1 // loop_footer_branch
      %10 = sbr.rel target = $region3
    $region8: #{tpu_custom_call.1} parent=1 // loop_exit
      _
    %302 = vsyncpa [#allocation3], 1
    %s303 = scalar_lea.sflag [#allocation3], 1
    %304 = vsyncpa %s303, 1

</llo_original>
